<compile_context>
chip_gen: v7x
topology: tpu7x:2x2x1
jax: 0.10.0
libtpu: 0.0.40
codegen_flags: <defaults>
</compile_context>

<pallas_src>
import jax
import jax.numpy as jnp
from jax.experimental import pallas as pl
from jax.experimental.pallas import tpu as pltpu

LANES = 128
EPS = 1e-6


def _charbonnier_kernel(x_ref, y_ref, o_ref):
    k = pl.program_id(1)

    @pl.when(k == 0)
    def _():
        o_ref[...] = jnp.zeros_like(o_ref)

    x = x_ref[...].astype(jnp.float32)
    y = y_ref[...].astype(jnp.float32)
    diff = (x - y) * jnp.float32(1.0 / 255.0)
    err = jnp.sqrt(diff * diff + jnp.float32(EPS))

    # (TM, 128) -> (TM//8, 8, 128); the axis-0 sum is vreg-wise VPU adds only.
    # The final (8, 128) -> scalar reduce happens once in the wrapper.
    o_ref[...] += err.reshape(-1, 8, LANES).sum(axis=0)


def _device_kind():
    try:
        return jax.devices()[0].device_kind.lower()
    except Exception:
        return ""


def l1_charbonnier_loss(x, y):
    """Pallas implementation of: sum(sqrt((x/255 - y/255)^2 + 1e-6)) / numel."""
    assert x.shape == y.shape, "X and Y must have the same shape"
    numel = int(x.size)

    xf = jnp.ravel(x)
    yf = jnp.ravel(y)

    kind = _device_kind()
    is_v7 = "v7" in kind
    target_tm = 8192 if is_v7 else 4096   # 4 MiB / 2 MiB per input per step (f32)
    nc = 2 if is_v7 else 1                # 2-way split only on 2-TC chips

    # Tile-aligned bulk goes through the kernel; the leftover tail through jnp.
    rows_avail = numel // LANES
    tm = min(target_tm, (rows_avail // 8) * 8)

    if tm == 0:
        # Too small for even one (8, 128) tile: pure-jnp fallback.
        diff = (xf.astype(jnp.float32) - yf.astype(jnp.float32)) * jnp.float32(1.0 / 255.0)
        total = jnp.sum(jnp.sqrt(diff * diff + jnp.float32(EPS)))
        return total / jnp.float32(numel)

    steps_total = rows_avail // tm
    steps_per_core = steps_total // nc
    if steps_per_core == 0:
        nc, steps_per_core = 1, steps_total
    bulk_rows = nc * steps_per_core * tm
    bulk = bulk_rows * LANES

    # Free (metadata-only) when bulk == numel, i.e. tile-aligned inputs.
    x2 = xf[:bulk].reshape(bulk_rows, LANES)
    y2 = yf[:bulk].reshape(bulk_rows, LANES)

    if nc == 2:
        core_sem = getattr(pltpu, "CORE_PARALLEL", "parallel")
        dim_sem = (core_sem, "arbitrary")
    else:
        dim_sem = ("arbitrary", "arbitrary")

    partials = pl.pallas_call(
        _charbonnier_kernel,
        out_shape=jax.ShapeDtypeStruct((nc * 8, LANES), jnp.float32),
        grid_spec=pltpu.PrefetchScalarGridSpec(
            num_scalar_prefetch=0,
            grid=(nc, steps_per_core),
            in_specs=[
                pl.BlockSpec((tm, LANES), lambda c, k: (c * steps_per_core + k, 0)),
                pl.BlockSpec((tm, LANES), lambda c, k: (c * steps_per_core + k, 0)),
            ],
            out_specs=pl.BlockSpec((8, LANES), lambda c, k: (c, 0)),
        ),
        compiler_params=pltpu.CompilerParams(dimension_semantics=dim_sem),
    )(x2, y2)

    total = jnp.sum(partials)

    tail = numel - bulk
    if tail:
        xt = xf[bulk:].astype(jnp.float32)
        yt = yf[bulk:].astype(jnp.float32)
        dt = (xt - yt) * jnp.float32(1.0 / 255.0)
        total = total + jnp.sum(jnp.sqrt(dt * dt + jnp.float32(EPS)))

    return total / jnp.float32(numel)


def _reference(x, y):
    diff = x.astype(jnp.float32) / 255.0 - y.astype(jnp.float32) / 255.0
    err = jnp.sqrt(diff * diff + 1e-6)
    return jnp.sum(err) / err.size


if __name__ == "__main__":
    key = jax.random.PRNGKey(0)
    kx, ky = jax.random.split(key)

    # NCHW image-like tensors (tile-aligned: 2*4*16*16 = 2048 = 16 rows of 128).
    shape = (2, 4, 16, 16)
    X = jax.random.uniform(kx, shape, dtype=jnp.float32) * 255.0
    Y = jax.random.uniform(ky, shape, dtype=jnp.float32) * 255.0
    loss = l1_charbonnier_loss(X, Y)
    jax.block_until_ready(loss)
    ref = _reference(X, Y)
    assert jnp.allclose(loss, ref, rtol=1e-5, atol=1e-6), (loss, ref)

    # Ragged shape: kernel handles the (8,128)-aligned bulk, jnp the small tail.
    shape2 = (2, 3, 17, 19)
    X2 = jax.random.uniform(kx, shape2, dtype=jnp.float32) * 255.0
    Y2 = jax.random.uniform(ky, shape2, dtype=jnp.float32) * 255.0
    loss2 = l1_charbonnier_loss(X2, Y2)
    jax.block_until_ready(loss2)
    ref2 = _reference(X2, Y2)
    assert jnp.allclose(loss2, ref2, rtol=1e-5, atol=1e-6), (loss2, ref2)

    print("KERNEL_OK")
</pallas_src>

<mosaic_0001>
module attributes {stable_mosaic.version = 11 : i64} {
  func.func @_charbonnier_kernel(%arg0: i32, %arg1: i32, %arg2: memref<16x128xf32, #tpu.memory_space<vmem>>, %arg3: memref<16x128xf32, #tpu.memory_space<vmem>>, %arg4: memref<8x128xf32, #tpu.memory_space<vmem>>) attributes {dimension_semantics = [#tpu.dimension_semantics<arbitrary>, #tpu.dimension_semantics<arbitrary>], iteration_bounds = array<i64: 1, 1>, scalar_prefetch = 0 : i64, scratch_operands = 0 : i64, tpu.core_type = #tpu.core_type<tc>, window_params = [{transform_indices = @transform_0, window_bounds = array<i64: 16, 128>}, {transform_indices = @transform_1, window_bounds = array<i64: 16, 128>}, {transform_indices = @transform_2, window_bounds = array<i64: 8, 128>}]} {
    %c0_i32 = arith.constant 0 : i32
    %0 = arith.cmpi eq, %arg1, %c0_i32 : i32
    %1 = arith.extui %0 : i1 to i32
    %c0_i32_0 = arith.constant 0 : i32
    %2 = arith.cmpi ne, %1, %c0_i32_0 : i32
    scf.if %2 {
      %cst_10 = arith.constant 0.000000e+00 : f32
      %17 = vector.broadcast %cst_10 : f32 to vector<8x128xf32>
      %c0_11 = arith.constant 0 : index
      %c0_12 = arith.constant 0 : index
      %18 = vector.load %arg4[%c0_11, %c0_12] : memref<8x128xf32, #tpu.memory_space<vmem>>, vector<8x128xf32>
      tpu.vector_store %arg4[%c0_11, %c0_12], %17 {strides = array<i32>} : memref<8x128xf32, #tpu.memory_space<vmem>>, vector<8x128xf32>,
    } else {
    }
    %c0 = arith.constant 0 : index
    %c0_1 = arith.constant 0 : index
    %3 = vector.load %arg2[%c0, %c0_1] : memref<16x128xf32, #tpu.memory_space<vmem>>, vector<16x128xf32>
    %c0_2 = arith.constant 0 : index
    %c0_3 = arith.constant 0 : index
    %4 = vector.load %arg3[%c0_2, %c0_3] : memref<16x128xf32, #tpu.memory_space<vmem>>, vector<16x128xf32>
    %5 = arith.subf %3, %4 : vector<16x128xf32>
    %cst = arith.constant 0.00392156886 : f32
    %6 = vector.broadcast %cst : f32 to vector<16x128xf32>
    %7 = arith.mulf %5, %6 : vector<16x128xf32>
    %8 = arith.mulf %7, %7 : vector<16x128xf32>
    %cst_4 = arith.constant 9.99999997E-7 : f32
    %9 = vector.broadcast %cst_4 : f32 to vector<16x128xf32>
    %10 = arith.addf %8, %9 : vector<16x128xf32>
    %11 = math.sqrt %10 : vector<16x128xf32>
    %c0_5 = arith.constant 0 : index
    %c0_6 = arith.constant 0 : index
    %12 = vector.load %arg4[%c0_5, %c0_6] : memref<8x128xf32, #tpu.memory_space<vmem>>, vector<8x128xf32>
    %13 = vector.shape_cast %11 : vector<16x128xf32> to vector<2x8x128xf32>
    %cst_7 = arith.constant dense<0.000000e+00> : vector<8x128xf32>
    %14 = vector.multi_reduction <add>, %13, %cst_7 [0] : vector<2x8x128xf32> to vector<8x128xf32>
    %15 = arith.addf %12, %14 : vector<8x128xf32>
    %c0_8 = arith.constant 0 : index
    %c0_9 = arith.constant 0 : index
    %16 = vector.load %arg4[%c0_8, %c0_9] : memref<8x128xf32, #tpu.memory_space<vmem>>, vector<8x128xf32>
    tpu.vector_store %arg4[%c0_8, %c0_9], %15 {strides = array<i32>} : memref<8x128xf32, #tpu.memory_space<vmem>>, vector<8x128xf32>,
    return
  }
  func.func @transform_0(%arg0: i32, %arg1: i32) -> (i32, i32) {
    %c1_i32 = arith.constant 1 : i32
    %0 = arith.muli %arg0, %c1_i32 : i32
    %1 = arith.addi %0, %arg1 : i32
    %c0_i32 = arith.constant 0 : i32
    %c0_i32_0 = arith.constant 0 : i32
    return %1, %c0_i32 : i32, i32
  }
  func.func @transform_1(%arg0: i32, %arg1: i32) -> (i32, i32) {
    %c1_i32 = arith.constant 1 : i32
    %0 = arith.muli %arg0, %c1_i32 : i32
    %1 = arith.addi %0, %arg1 : i32
    %c0_i32 = arith.constant 0 : i32
    %c0_i32_0 = arith.constant 0 : i32
    return %1, %c0_i32 : i32, i32
  }
  func.func @transform_2(%arg0: i32, %arg1: i32) -> (i32, i32) {
    %c0_i32 = arith.constant 0 : i32
    %c0_i32_0 = arith.constant 0 : i32
    return %arg0, %c0_i32 : i32, i32
  }
}

</mosaic_0001>

<llo_original>
// kernel: tpu_custom_call.1
$region0: #{tpu_custom_call.1}
  #allocation0 [shape = 'u32[]', space=smem, size = 0x4, offset = 0x4, fixed_abs, tag = 'smem constant byte address 0x4 - core index']
  #allocation1 [shape = 'u32[144,128]{1,0:T(1,128)}', space=vmem, size = 0x12000, scoped, tag = 'internal scratch']
  %s0 = inlined_call_operand.hbm [shape: f32[16,128], index: 0, kind: input, shape index: {}]
  %s1 = inlined_call_operand.hbm [shape: f32[16,128], index: 1, kind: input, shape index: {}]
  %s2 = inlined_call_operand.hbm [shape: f32[8,128], index: 2, kind: output, shape index: {}]
  %s3 = sld [smem:[#allocation0]]
  $region30: #{tpu_custom_call.1} parent=0
    _
  %s5 = ssub.s32 1, %s3
  %s6 = scalar_select 0, %s5, %s3
  $region1: #{tpu_custom_call.1} parent=0
    #allocation2 [shape = 'u8[8192]{0}', space=vmem, size = 0x2000, scoped, tag = 'input window, operand 0, single buffered']
    #allocation3 [shape = 's32[1]{0}', space=sflag, size = 0x4, scoped, tag = 'scoped memory for tpu_custom_call.1']
    #allocation4 [shape = 's32[1]{0}', space=sflag, size = 0x4, scoped, tag = 'scoped memory for tpu_custom_call.1']
    #allocation5 [shape = 'u8[8192]{0}', space=vmem, size = 0x2000, scoped, tag = 'input window, operand 1, single buffered']
    #allocation6 [shape = 's32[1]{0}', space=sflag, size = 0x4, scoped, tag = 'scoped memory for tpu_custom_call.1']
    #allocation7 [shape = 'u8[4096]{0}', space=vmem, size = 0x1000, scoped, tag = 'output window, operand 0, single buffered']
    %7 = vsyncpa [#allocation3], 0
    %8 = vsyncpa [#allocation6], 0
    %9 = vsyncpa [#allocation4], 0
    // Predicated region
    $region2: #{tpu_custom_call.1} parent=1 // pred_check
      _
    $region3: #{tpu_custom_call.1} parent=1 // pred_check_branch
      %11 = sbr.rel (0) target = $region5
    $region4: #{tpu_custom_call.1} parent=1 // pred_region
      %s12 = sadd.s32 0, 0
      %s13 = smul.u32 2, %s12
      %s15 = ssub.s32 256, 256
      %16 = vsyncadd [#allocation3], %s15
      %s17 = smul.addr %s13, 128
      %s18 = scalar_lea.hbm %s0, %s17
      %s19 = sshll.u32 [#allocation2], 4
      %s20 = int_to_ptr.vmem [resolvable:$true] %s19
      %25 = dma.hbm_to_vmem [thread:$0]  %s18, 256, %s20, [#allocation3], 128, 128, 8
    $region5: #{tpu_custom_call.1} parent=1 // pred_fallthru
      _
    // Predicated region
    $region6: #{tpu_custom_call.1} parent=1 // pred_check
      _
    $region7: #{tpu_custom_call.1} parent=1 // pred_check_branch
      %27 = sbr.rel (0) target = $region9
    $region8: #{tpu_custom_call.1} parent=1 // pred_region
      %s28 = sadd.s32 0, 0
      %s29 = smul.u32 2, %s28
      %s31 = ssub.s32 256, 256
      %32 = vsyncadd [#allocation6], %s31
      %s33 = smul.addr %s29, 128
      %s34 = scalar_lea.hbm %s1, %s33
      %s35 = sshll.u32 [#allocation5], 4
      %s36 = int_to_ptr.vmem [resolvable:$true] %s35
      %41 = dma.hbm_to_vmem [thread:$0]  %s34, 256, %s36, [#allocation6], 128, 128, 8
    $region9: #{tpu_custom_call.1} parent=1 // pred_fallthru
      _
    // Predicated region
    $region10: #{tpu_custom_call.1} parent=1 // pred_check
      _
    $region11: #{tpu_custom_call.1} parent=1 // pred_check_branch
      %43 = sbr.rel (0) target = $region13
    $region12: #{tpu_custom_call.1} parent=1 // pred_region
      %44 = dma.done [#allocation3], 256
    $region13: #{tpu_custom_call.1} parent=1 // pred_fallthru
      _
    // Predicated region
    $region14: #{tpu_custom_call.1} parent=1 // pred_check
      _
    $region15: #{tpu_custom_call.1} parent=1 // pred_check_branch
      %46 = sbr.rel (0) target = $region17
    $region16: #{tpu_custom_call.1} parent=1 // pred_region
      %47 = dma.done [#allocation6], 256
    $region17: #{tpu_custom_call.1} parent=1 // pred_fallthru
      _
    %s48 = sadd.s32 0, 0
    %s49 = smul.u32 2, %s48
    %s50 = sadd.s32 0, 0
    %s51 = smul.u32 2, %s50
    %p52 = scmp.eq.s32.totalorder 0, 0
    // Predicated region
    $region18: #{tpu_custom_call.1} parent=1 // pred_check
      %p53 = pneg %p52
    $region19: #{tpu_custom_call.1} parent=1 // pred_check_branch
      %55 = sbr.rel (%p53) target = $region21
    $region20: #{tpu_custom_call.1} parent=1 // pred_region
      %56 = vst [vmem:[#allocation7] sm:$0xff] 0.0
    $region21: #{tpu_custom_call.1} parent=1 // pred_fallthru
      _
    %v57 = vld [vmem:[#allocation2] sm:$0xff]
    %v58 = vld [vmem:[#allocation2 + $0x8] sm:$0xff]
    %v59 = vld [vmem:[#allocation5] sm:$0xff]
    %v60 = vld [vmem:[#allocation5 + $0x8] sm:$0xff]
    %v61 = vsub.f32 %v57, %v59
    %v62 = vsub.f32 %v58, %v60
    %v63 = vmul.f32 %v61, 0.003921569
    %v64 = vmul.f32 %v62, 0.003921569
    %v65 = vmul.f32 %v63, %v63
    %v66 = vmul.f32 %v64, %v64
    %v67 = vadd.f32 %v65, 1e-06
    %v68 = vadd.f32 %v66, 1e-06
    %v69 = vrsqrt.pop %v67
    %v70 = vmul.f32 %v67, %v69
    %vm71 = vcmp.eq.f32.partialorder %v67, inf
    %v72 = vsel %vm71, %v67, %v70
    %vm73 = vcmp.eq.f32.partialorder %v67, 0.0
    %v74 = vand.u32 %v67, 2147483648
    %v75 = vsel %vm73, %v74, %v72
    %v76 = vrsqrt.pop %v68
    %v77 = vmul.f32 %v68, %v76
    %vm78 = vcmp.eq.f32.partialorder %v68, inf
    %v79 = vsel %vm78, %v68, %v77
    %vm80 = vcmp.eq.f32.partialorder %v68, 0.0
    %v81 = vand.u32 %v68, 2147483648
    %v82 = vsel %vm80, %v81, %v79
    %v83 = vld [vmem:[#allocation7] sm:$0xff]
    %v84 = vadd.f32 %v75, %v82
    %v85 = vadd.f32 %v83, %v84
    %86 = vst [vmem:[#allocation7] sm:$0xff] %v85
    // Predicated region
    $region22: #{tpu_custom_call.1} parent=1 // pred_check
      _
    $region23: #{tpu_custom_call.1} parent=1 // pred_check_branch
      %88 = sbr.rel (0) target = $region25
    $region24: #{tpu_custom_call.1} parent=1 // pred_region
      %s90 = ssub.s32 128, 128
      %91 = vsyncadd [#allocation4], %s90
      %s93 = sshll.u32 [#allocation7], 4
      %s94 = int_to_ptr.vmem [resolvable:$true] %s93
      %96 = dma.vmem_to_hbm [thread:$0]  %s94, 128, %s2, [#allocation4]
    $region25: #{tpu_custom_call.1} parent=1 // pred_fallthru
      _
    // Predicated region
    $region26: #{tpu_custom_call.1} parent=1 // pred_check
      _
    $region27: #{tpu_custom_call.1} parent=1 // pred_check_branch
      %98 = sbr.rel (0) target = $region29
    $region28: #{tpu_custom_call.1} parent=1 // pred_region
      %99 = dma.done [#allocation4], 128
    $region29: #{tpu_custom_call.1} parent=1 // pred_fallthru
      _
    %100 = vsyncpa [#allocation3], 1
    %101 = vsyncpa [#allocation6], 1
    %102 = vsyncpa [#allocation4], 1

</llo_original>
